<compile_context>
chip_gen: v7x
topology: tpu7x:2x2x1
jax: 0.10.0
libtpu: 0.0.40
codegen_flags: <defaults>
</compile_context>

<pallas_src>
import functools

import jax
import jax.numpy as jnp
from jax import lax
from jax.experimental import pallas as pl
from jax.experimental.pallas import tpu as pltpu


def _round_up(x, m):
    return (x + m - 1) // m * m


# ---------------------------------------------------------------------------
# Fused kernel: per-tap spatial sums of the padded image (pool fold) ->
# stem-weight combine -> heads -> sigmoid.   grid = (B,), fully parallel.
# ---------------------------------------------------------------------------
def _fused_stem_pool_heads_kernel(inv_s, KH, KW, stride, Ho, Wo, Cin,
                                  x_ref, w_ref, hw_ref, hb_ref, o_ref):
    Hp = x_ref.shape[-2]
    Wp = x_ref.shape[-1]

    w = w_ref[...]                                   # (K, Cout_pad) f32
    cout_pad = w.shape[-1]

    row_idx = lax.broadcasted_iota(jnp.int32, (Hp, 1), 0)
    col_idx = lax.broadcasted_iota(jnp.int32, (1, Wp), 1)
    if stride == 2:                                  # cheap parity (this model)
        row_phase = jnp.bitwise_and(row_idx, 1)
        col_phase = jnp.bitwise_and(col_idx, 1)
    else:                                            # general fallback
        row_phase = row_idx % stride
        col_phase = col_idx % stride

    x_all = x_ref[0]                                 # (Cin, Hp, Wp) bf16

    # acc[0, cout] accumulates sum_k tap_k * w[k, cout]  (f32, lane-dense).
    acc = jnp.zeros((1, cout_pad), jnp.float32)
    for cin in range(Cin):
        xp = x_all[cin].astype(jnp.float32)          # (Hp, Wp)
        for kh in range(KH):
            # Rows kh, kh+stride, ..., kh+stride*(Ho-1) of the padded image.
            rmask = ((row_idx >= kh) & (row_idx < kh + stride * Ho)
                     & (row_phase == (kh % stride)))
            row_sums = jnp.sum(jnp.where(rmask, xp, 0.0),
                               axis=0, keepdims=True)        # (1, Wp)
            for kw in range(KW):
                cmask = ((col_idx >= kw) & (col_idx < kw + stride * Wo)
                         & (col_phase == (kw % stride)))
                tap = jnp.sum(jnp.where(cmask, row_sums, 0.0),
                              axis=1, keepdims=True)          # (1, 1)
                k = (kh * KW + kw) * Cin + cin
                acc = acc + tap * w[k:k + 1, :]

    pooled = acc * inv_s                             # (1, Cout_pad) f32
    # Dropout(0.4) is identity at eval time.
    logits = jnp.dot(pooled, hw_ref[...],
                     preferred_element_type=jnp.float32) + hb_ref[...]
    o_ref[0] = jax.nn.sigmoid(logits).astype(o_ref.dtype)


def osr_stem_pool_heads(x_nchw, stem_w_oihw, head_w, head_b, *,
                        stride=2, pad=1):
    """Conv2d(Cin,Cout,3,s=2,p=1,bias=False) -> avgpool(1,1) -> heads -> sigmoid."""
    B, Cin, H, W = x_nchw.shape
    Cout, Cin_w, KH, KW = stem_w_oihw.shape
    assert Cin_w == Cin
    C = head_w.shape[1]
    Ho = (H + 2 * pad - KH) // stride + 1
    Wo = (W + 2 * pad - KW) // stride + 1
    S = Ho * Wo
    Hp, Wp = H + 2 * pad, W + 2 * pad

    K = KH * KW * Cin
    Cout_pad = _round_up(Cout, 128)                  # lane-dense combine dim
    C_pad = _round_up(C, 128)                        # lane-dense head output

    # Only large HBM operand: the zero-padded image, bf16, read exactly once.
    # TODO(synk): for inputs too large for a whole-image VMEM block (Cin*Hp*Wp
    # bf16 of several MiB), add spatial row tiling with a (KH-1)-row halo.
    xpad = jnp.pad(x_nchw, ((0, 0), (0, 0), (pad, pad), (pad, pad)))
    xpad = xpad.astype(jnp.bfloat16)

    # (Cout, Cin, KH, KW) -> (K, Cout_pad); row k = tap (kh, kw, cin), matching
    # the kernel's static loop order.  Kept f32: the pool fold removed the big
    # matmul, so the weights never feed the MXU contraction in bf16.
    w = jnp.transpose(stem_w_oihw, (2, 3, 1, 0)).reshape(K, Cout)
    w = jnp.pad(w.astype(jnp.float32), ((0, 0), (0, Cout_pad - Cout)))

    hw = jnp.pad(head_w.astype(jnp.float32),
                 ((0, Cout_pad - Cout), (0, C_pad - C)))
    hb = jnp.pad(head_b.reshape(1, -1).astype(jnp.float32),
                 ((0, 0), (0, C_pad - C)))

    kernel = functools.partial(_fused_stem_pool_heads_kernel,
                               1.0 / S, KH, KW, stride, Ho, Wo, Cin)

    out = pl.pallas_call(
        kernel,
        out_shape=jax.ShapeDtypeStruct((B, 1, C_pad), jnp.float32),
        grid_spec=pltpu.PrefetchScalarGridSpec(
            num_scalar_prefetch=0,
            grid=(B,),
            in_specs=[
                pl.BlockSpec((1, Cin, Hp, Wp), lambda b: (b, 0, 0, 0)),
                pl.BlockSpec((K, Cout_pad), lambda b: (0, 0)),
                pl.BlockSpec((Cout_pad, C_pad), lambda b: (0, 0)),
                pl.BlockSpec((1, C_pad), lambda b: (0, 0)),
            ],
            out_specs=pl.BlockSpec((1, 1, C_pad), lambda b: (b, 0, 0)),
        ),
        compiler_params=pltpu.CompilerParams(
            # Per-batch output blocks -> independent grid steps: safe to shard
            # the batch axis across v7x's two TensorCores.
            dimension_semantics=("parallel",),
            vmem_limit_bytes=32 * 1024 * 1024,
        ),
    )(xpad, w, hw, hb)
    return out[:, 0, :C]


# ---------------------------------------------------------------------------
# Full forward (mirrors OSRClassifier.forward for the layers it defines)
# ---------------------------------------------------------------------------
@jax.jit
def osr_classifier_forward(x_nchw, params):
    # TODO(synk): remaining pretrained EfficientNet-B3 backbone blocks are not
    # reproduced; only the replaced stem conv feeds the pool/heads here.
    return osr_stem_pool_heads(x_nchw, params["stem_w"],
                               params["head_w"], params["head_b"])


def init_params(key, *, in_ch=1, stem_out=40, num_classes=4):
    k1, k2, k3 = jax.random.split(key, 3)
    feature_dim = stem_out  # see TODO(synk) above (real model uses 1536)
    stem_w = jax.random.normal(k1, (stem_out, in_ch, 3, 3), jnp.float32) * 0.1
    # nn.ModuleList of num_classes Linear(feature_dim, 1) heads, stacked (F, C)
    head_w = jax.random.normal(k2, (feature_dim, num_classes), jnp.float32) * 0.1
    head_b = jax.random.normal(k3, (1, num_classes), jnp.float32) * 0.1
    return {"stem_w": stem_w, "head_w": head_w, "head_b": head_b}


def _reference_forward(x_nchw, params):
    """Pure-JAX reference of the implemented subset (for correctness check)."""
    feats = lax.conv_general_dilated(
        x_nchw, params["stem_w"], window_strides=(2, 2),
        padding=((1, 1), (1, 1)),
        dimension_numbers=("NCHW", "OIHW", "NCHW"))
    pooled = jnp.mean(feats, axis=(2, 3))                       # (B, Cout)
    logits = pooled @ params["head_w"] + params["head_b"]
    return jax.nn.sigmoid(logits)


if __name__ == "__main__":
    key = jax.random.PRNGKey(0)
    kx, kp = jax.random.split(key)

    classid_list = [0, 1, 2, 3]               # num_classes = 4
    B, Cin, H, W = 2, 1, 16, 16               # grayscale input (stem takes 1 ch)
    x = jax.random.normal(kx, (B, Cin, H, W), jnp.float32)

    params = init_params(kp, in_ch=Cin, stem_out=40,
                         num_classes=len(classid_list))

    out = jax.block_until_ready(osr_classifier_forward(x, params))

    assert out.shape == (B, len(classid_list)), out.shape
    assert bool(jnp.all((out > 0.0) & (out < 1.0)))             # sigmoid range

    ref = _reference_forward(x, params)
    assert bool(jnp.allclose(out, ref, atol=1e-2, rtol=1e-2)), (
        jnp.max(jnp.abs(out - ref)))

    print("KERNEL_OK")
</pallas_src>

<mosaic_0001>
module attributes {stable_mosaic.version = 11 : i64} {
  func.func @_fused_stem_pool_heads_kernel(%arg0: i32, %arg1: memref<1x1x18x18xbf16, #tpu.memory_space<vmem>>, %arg2: memref<9x128xf32, #tpu.memory_space<vmem>>, %arg3: memref<128x128xf32, #tpu.memory_space<vmem>>, %arg4: memref<1x128xf32, #tpu.memory_space<vmem>>, %arg5: memref<1x1x128xf32, #tpu.memory_space<vmem>>) attributes {dimension_semantics = [#tpu.dimension_semantics<parallel>], iteration_bounds = array<i64: 2>, scalar_prefetch = 0 : i64, scratch_operands = 0 : i64, tpu.core_type = #tpu.core_type<tc>, window_params = [{transform_indices = @transform_0, window_bounds = array<i64: 1, 1, 18, 18>}, {pipeline_mode = #tpu.pipeline_mode<synchronous>, transform_indices = @transform_1, window_bounds = array<i64: 9, 128>}, {pipeline_mode = #tpu.pipeline_mode<synchronous>, transform_indices = @transform_2, window_bounds = array<i64: 128, 128>}, {pipeline_mode = #tpu.pipeline_mode<synchronous>, transform_indices = @transform_3, window_bounds = array<i64: 1, 128>}, {transform_indices = @transform_4, window_bounds = array<i64: 1, 1, 128>}]} {
    %c0 = arith.constant 0 : index
    %c0_0 = arith.constant 0 : index
    %0 = vector.load %arg2[%c0, %c0_0] : memref<9x128xf32, #tpu.memory_space<vmem>>, vector<9x128xf32>
    %1 = tpu.iota {dimensions = array<i32: 0>} : vector<18x1xi32>
    %2 = tpu.iota {dimensions = array<i32: 1>} : vector<1x18xi32>
    %c1_i32 = arith.constant 1 : i32
    %3 = vector.broadcast %c1_i32 : i32 to vector<18x1xi32>
    %4 = arith.andi %1, %3 : vector<18x1xi32>
    %c1_i32_1 = arith.constant 1 : i32
    %5 = vector.broadcast %c1_i32_1 : i32 to vector<1x18xi32>
    %6 = arith.andi %2, %5 : vector<1x18xi32>
    %c0_2 = arith.constant 0 : index
    %c0_3 = arith.constant 0 : index
    %c0_4 = arith.constant 0 : index
    %c0_5 = arith.constant 0 : index
    %7 = vector.load %arg1[%c0_2, %c0_3, %c0_4, %c0_5] : memref<1x1x18x18xbf16, #tpu.memory_space<vmem>>, vector<1x1x18x18xbf16>
    %8 = vector.shape_cast %7 : vector<1x1x18x18xbf16> to vector<1x18x18xbf16>
    %cst = arith.constant 0.000000e+00 : f32
    %9 = vector.broadcast %cst : f32 to vector<1x128xf32>
    %10 = vector.shape_cast %8 : vector<1x18x18xbf16> to vector<18x18xbf16>
    %11 = arith.extf %10 : vector<18x18xbf16> to vector<18x18xf32>
    %c0_i32 = arith.constant 0 : i32
    %12 = vector.broadcast %c0_i32 : i32 to vector<18x1xi32>
    %13 = arith.cmpi sge, %1, %12 : vector<18x1xi32>
    %c16_i32 = arith.constant 16 : i32
    %14 = vector.broadcast %c16_i32 : i32 to vector<18x1xi32>
    %15 = arith.cmpi slt, %1, %14 : vector<18x1xi32>
    %16 = arith.andi %13, %15 : vector<18x1xi1>
    %c0_i32_6 = arith.constant 0 : i32
    %17 = vector.broadcast %c0_i32_6 : i32 to vector<18x1xi32>
    %18 = arith.cmpi eq, %4, %17 : vector<18x1xi32>
    %19 = arith.andi %16, %18 : vector<18x1xi1>
    %cst_7 = arith.constant 0.000000e+00 : f32
    %20 = vector.shape_cast %19 : vector<18x1xi1> to vector<18x1xi1>
    %21 = vector.broadcast %20 : vector<18x1xi1> to vector<18x18xi1>
    %22 = vector.broadcast %cst_7 : f32 to vector<18x18xf32>
    %23 = arith.select %21, %11, %22 : vector<18x18xi1>, vector<18x18xf32>
    %cst_8 = arith.constant dense<0.000000e+00> : vector<18xf32>
    %24 = vector.multi_reduction <add>, %23, %cst_8 [0] : vector<18x18xf32> to vector<18xf32>
    %25 = vector.shape_cast %24 : vector<18xf32> to vector<1x18xf32>
    %c0_i32_9 = arith.constant 0 : i32
    %26 = vector.broadcast %c0_i32_9 : i32 to vector<1x18xi32>
    %27 = arith.cmpi sge, %2, %26 : vector<1x18xi32>
    %c16_i32_10 = arith.constant 16 : i32
    %28 = vector.broadcast %c16_i32_10 : i32 to vector<1x18xi32>
    %29 = arith.cmpi slt, %2, %28 : vector<1x18xi32>
    %30 = arith.andi %27, %29 : vector<1x18xi1>
    %c0_i32_11 = arith.constant 0 : i32
    %31 = vector.broadcast %c0_i32_11 : i32 to vector<1x18xi32>
    %32 = arith.cmpi eq, %6, %31 : vector<1x18xi32>
    %33 = arith.andi %30, %32 : vector<1x18xi1>
    %cst_12 = arith.constant 0.000000e+00 : f32
    %34 = vector.broadcast %cst_12 : f32 to vector<1x18xf32>
    %35 = arith.select %33, %25, %34 : vector<1x18xi1>, vector<1x18xf32>
    %cst_13 = arith.constant dense<0.000000e+00> : vector<1xf32>
    %36 = vector.multi_reduction <add>, %35, %cst_13 [1] : vector<1x18xf32> to vector<1xf32>
    %37 = vector.shape_cast %36 : vector<1xf32> to vector<1x1xf32>
    %38 = vector.extract_strided_slice %0 {offsets = [0, 0], sizes = [1, 128], strides = [1, 1]} : vector<9x128xf32> to vector<1x128xf32>
    %39 = vector.broadcast %37 : vector<1x1xf32> to vector<1x128xf32>
    %40 = arith.mulf %39, %38 : vector<1x128xf32>
    %41 = arith.addf %9, %40 : vector<1x128xf32>
    %c1_i32_14 = arith.constant 1 : i32
    %42 = vector.broadcast %c1_i32_14 : i32 to vector<1x18xi32>
    %43 = arith.cmpi sge, %2, %42 : vector<1x18xi32>
    %c17_i32 = arith.constant 17 : i32
    %44 = vector.broadcast %c17_i32 : i32 to vector<1x18xi32>
    %45 = arith.cmpi slt, %2, %44 : vector<1x18xi32>
    %46 = arith.andi %43, %45 : vector<1x18xi1>
    %c1_i32_15 = arith.constant 1 : i32
    %47 = vector.broadcast %c1_i32_15 : i32 to vector<1x18xi32>
    %48 = arith.cmpi eq, %6, %47 : vector<1x18xi32>
    %49 = arith.andi %46, %48 : vector<1x18xi1>
    %cst_16 = arith.constant 0.000000e+00 : f32
    %50 = vector.broadcast %cst_16 : f32 to vector<1x18xf32>
    %51 = arith.select %49, %25, %50 : vector<1x18xi1>, vector<1x18xf32>
    %cst_17 = arith.constant dense<0.000000e+00> : vector<1xf32>
    %52 = vector.multi_reduction <add>, %51, %cst_17 [1] : vector<1x18xf32> to vector<1xf32>
    %53 = vector.shape_cast %52 : vector<1xf32> to vector<1x1xf32>
    %54 = vector.extract_strided_slice %0 {offsets = [1, 0], sizes = [1, 128], strides = [1, 1]} : vector<9x128xf32> to vector<1x128xf32>
    %55 = vector.broadcast %53 : vector<1x1xf32> to vector<1x128xf32>
    %56 = arith.mulf %55, %54 : vector<1x128xf32>
    %57 = arith.addf %41, %56 : vector<1x128xf32>
    %c2_i32 = arith.constant 2 : i32
    %58 = vector.broadcast %c2_i32 : i32 to vector<1x18xi32>
    %59 = arith.cmpi sge, %2, %58 : vector<1x18xi32>
    %c18_i32 = arith.constant 18 : i32
    %60 = vector.broadcast %c18_i32 : i32 to vector<1x18xi32>
    %61 = arith.cmpi slt, %2, %60 : vector<1x18xi32>
    %62 = arith.andi %59, %61 : vector<1x18xi1>
    %c0_i32_18 = arith.constant 0 : i32
    %63 = vector.broadcast %c0_i32_18 : i32 to vector<1x18xi32>
    %64 = arith.cmpi eq, %6, %63 : vector<1x18xi32>
    %65 = arith.andi %62, %64 : vector<1x18xi1>
    %cst_19 = arith.constant 0.000000e+00 : f32
    %66 = vector.broadcast %cst_19 : f32 to vector<1x18xf32>
    %67 = arith.select %65, %25, %66 : vector<1x18xi1>, vector<1x18xf32>
    %cst_20 = arith.constant dense<0.000000e+00> : vector<1xf32>
    %68 = vector.multi_reduction <add>, %67, %cst_20 [1] : vector<1x18xf32> to vector<1xf32>
    %69 = vector.shape_cast %68 : vector<1xf32> to vector<1x1xf32>
    %70 = vector.extract_strided_slice %0 {offsets = [2, 0], sizes = [1, 128], strides = [1, 1]} : vector<9x128xf32> to vector<1x128xf32>
    %71 = vector.broadcast %69 : vector<1x1xf32> to vector<1x128xf32>
    %72 = arith.mulf %71, %70 : vector<1x128xf32>
    %73 = arith.addf %57, %72 : vector<1x128xf32>
    %c1_i32_21 = arith.constant 1 : i32
    %74 = vector.broadcast %c1_i32_21 : i32 to vector<18x1xi32>
    %75 = arith.cmpi sge, %1, %74 : vector<18x1xi32>
    %c17_i32_22 = arith.constant 17 : i32
    %76 = vector.broadcast %c17_i32_22 : i32 to vector<18x1xi32>
    %77 = arith.cmpi slt, %1, %76 : vector<18x1xi32>
    %78 = arith.andi %75, %77 : vector<18x1xi1>
    %c1_i32_23 = arith.constant 1 : i32
    %79 = vector.broadcast %c1_i32_23 : i32 to vector<18x1xi32>
    %80 = arith.cmpi eq, %4, %79 : vector<18x1xi32>
    %81 = arith.andi %78, %80 : vector<18x1xi1>
    %cst_24 = arith.constant 0.000000e+00 : f32
    %82 = vector.shape_cast %81 : vector<18x1xi1> to vector<18x1xi1>
    %83 = vector.broadcast %82 : vector<18x1xi1> to vector<18x18xi1>
    %84 = vector.broadcast %cst_24 : f32 to vector<18x18xf32>
    %85 = arith.select %83, %11, %84 : vector<18x18xi1>, vector<18x18xf32>
    %cst_25 = arith.constant dense<0.000000e+00> : vector<18xf32>
    %86 = vector.multi_reduction <add>, %85, %cst_25 [0] : vector<18x18xf32> to vector<18xf32>
    %87 = vector.shape_cast %86 : vector<18xf32> to vector<1x18xf32>
    %c0_i32_26 = arith.constant 0 : i32
    %88 = vector.broadcast %c0_i32_26 : i32 to vector<1x18xi32>
    %89 = arith.cmpi sge, %2, %88 : vector<1x18xi32>
    %c16_i32_27 = arith.constant 16 : i32
    %90 = vector.broadcast %c16_i32_27 : i32 to vector<1x18xi32>
    %91 = arith.cmpi slt, %2, %90 : vector<1x18xi32>
    %92 = arith.andi %89, %91 : vector<1x18xi1>
    %c0_i32_28 = arith.constant 0 : i32
    %93 = vector.broadcast %c0_i32_28 : i32 to vector<1x18xi32>
    %94 = arith.cmpi eq, %6, %93 : vector<1x18xi32>
    %95 = arith.andi %92, %94 : vector<1x18xi1>
    %cst_29 = arith.constant 0.000000e+00 : f32
    %96 = vector.broadcast %cst_29 : f32 to vector<1x18xf32>
    %97 = arith.select %95, %87, %96 : vector<1x18xi1>, vector<1x18xf32>
    %cst_30 = arith.constant dense<0.000000e+00> : vector<1xf32>
    %98 = vector.multi_reduction <add>, %97, %cst_30 [1] : vector<1x18xf32> to vector<1xf32>
    %99 = vector.shape_cast %98 : vector<1xf32> to vector<1x1xf32>
    %100 = vector.extract_strided_slice %0 {offsets = [3, 0], sizes = [1, 128], strides = [1, 1]} : vector<9x128xf32> to vector<1x128xf32>
    %101 = vector.broadcast %99 : vector<1x1xf32> to vector<1x128xf32>
    %102 = arith.mulf %101, %100 : vector<1x128xf32>
    %103 = arith.addf %73, %102 : vector<1x128xf32>
    %c1_i32_31 = arith.constant 1 : i32
    %104 = vector.broadcast %c1_i32_31 : i32 to vector<1x18xi32>
    %105 = arith.cmpi sge, %2, %104 : vector<1x18xi32>
    %c17_i32_32 = arith.constant 17 : i32
    %106 = vector.broadcast %c17_i32_32 : i32 to vector<1x18xi32>
    %107 = arith.cmpi slt, %2, %106 : vector<1x18xi32>
    %108 = arith.andi %105, %107 : vector<1x18xi1>
    %c1_i32_33 = arith.constant 1 : i32
    %109 = vector.broadcast %c1_i32_33 : i32 to vector<1x18xi32>
    %110 = arith.cmpi eq, %6, %109 : vector<1x18xi32>
    %111 = arith.andi %108, %110 : vector<1x18xi1>
    %cst_34 = arith.constant 0.000000e+00 : f32
    %112 = vector.broadcast %cst_34 : f32 to vector<1x18xf32>
    %113 = arith.select %111, %87, %112 : vector<1x18xi1>, vector<1x18xf32>
    %cst_35 = arith.constant dense<0.000000e+00> : vector<1xf32>
    %114 = vector.multi_reduction <add>, %113, %cst_35 [1] : vector<1x18xf32> to vector<1xf32>
    %115 = vector.shape_cast %114 : vector<1xf32> to vector<1x1xf32>
    %116 = vector.extract_strided_slice %0 {offsets = [4, 0], sizes = [1, 128], strides = [1, 1]} : vector<9x128xf32> to vector<1x128xf32>
    %117 = vector.broadcast %115 : vector<1x1xf32> to vector<1x128xf32>
    %118 = arith.mulf %117, %116 : vector<1x128xf32>
    %119 = arith.addf %103, %118 : vector<1x128xf32>
    %c2_i32_36 = arith.constant 2 : i32
    %120 = vector.broadcast %c2_i32_36 : i32 to vector<1x18xi32>
    %121 = arith.cmpi sge, %2, %120 : vector<1x18xi32>
    %c18_i32_37 = arith.constant 18 : i32
    %122 = vector.broadcast %c18_i32_37 : i32 to vector<1x18xi32>
    %123 = arith.cmpi slt, %2, %122 : vector<1x18xi32>
    %124 = arith.andi %121, %123 : vector<1x18xi1>
    %c0_i32_38 = arith.constant 0 : i32
    %125 = vector.broadcast %c0_i32_38 : i32 to vector<1x18xi32>
    %126 = arith.cmpi eq, %6, %125 : vector<1x18xi32>
    %127 = arith.andi %124, %126 : vector<1x18xi1>
    %cst_39 = arith.constant 0.000000e+00 : f32
    %128 = vector.broadcast %cst_39 : f32 to vector<1x18xf32>
    %129 = arith.select %127, %87, %128 : vector<1x18xi1>, vector<1x18xf32>
    %cst_40 = arith.constant dense<0.000000e+00> : vector<1xf32>
    %130 = vector.multi_reduction <add>, %129, %cst_40 [1] : vector<1x18xf32> to vector<1xf32>
    %131 = vector.shape_cast %130 : vector<1xf32> to vector<1x1xf32>
    %132 = vector.extract_strided_slice %0 {offsets = [5, 0], sizes = [1, 128], strides = [1, 1]} : vector<9x128xf32> to vector<1x128xf32>
    %133 = vector.broadcast %131 : vector<1x1xf32> to vector<1x128xf32>
    %134 = arith.mulf %133, %132 : vector<1x128xf32>
    %135 = arith.addf %119, %134 : vector<1x128xf32>
    %c2_i32_41 = arith.constant 2 : i32
    %136 = vector.broadcast %c2_i32_41 : i32 to vector<18x1xi32>
    %137 = arith.cmpi sge, %1, %136 : vector<18x1xi32>
    %c18_i32_42 = arith.constant 18 : i32
    %138 = vector.broadcast %c18_i32_42 : i32 to vector<18x1xi32>
    %139 = arith.cmpi slt, %1, %138 : vector<18x1xi32>
    %140 = arith.andi %137, %139 : vector<18x1xi1>
    %c0_i32_43 = arith.constant 0 : i32
    %141 = vector.broadcast %c0_i32_43 : i32 to vector<18x1xi32>
    %142 = arith.cmpi eq, %4, %141 : vector<18x1xi32>
    %143 = arith.andi %140, %142 : vector<18x1xi1>
    %cst_44 = arith.constant 0.000000e+00 : f32
    %144 = vector.shape_cast %143 : vector<18x1xi1> to vector<18x1xi1>
    %145 = vector.broadcast %144 : vector<18x1xi1> to vector<18x18xi1>
    %146 = vector.broadcast %cst_44 : f32 to vector<18x18xf32>
    %147 = arith.select %145, %11, %146 : vector<18x18xi1>, vector<18x18xf32>
    %cst_45 = arith.constant dense<0.000000e+00> : vector<18xf32>
    %148 = vector.multi_reduction <add>, %147, %cst_45 [0] : vector<18x18xf32> to vector<18xf32>
    %149 = vector.shape_cast %148 : vector<18xf32> to vector<1x18xf32>
    %c0_i32_46 = arith.constant 0 : i32
    %150 = vector.broadcast %c0_i32_46 : i32 to vector<1x18xi32>
    %151 = arith.cmpi sge, %2, %150 : vector<1x18xi32>
    %c16_i32_47 = arith.constant 16 : i32
    %152 = vector.broadcast %c16_i32_47 : i32 to vector<1x18xi32>
    %153 = arith.cmpi slt, %2, %152 : vector<1x18xi32>
    %154 = arith.andi %151, %153 : vector<1x18xi1>
    %c0_i32_48 = arith.constant 0 : i32
    %155 = vector.broadcast %c0_i32_48 : i32 to vector<1x18xi32>
    %156 = arith.cmpi eq, %6, %155 : vector<1x18xi32>
    %157 = arith.andi %154, %156 : vector<1x18xi1>
    %cst_49 = arith.constant 0.000000e+00 : f32
    %158 = vector.broadcast %cst_49 : f32 to vector<1x18xf32>
    %159 = arith.select %157, %149, %158 : vector<1x18xi1>, vector<1x18xf32>
    %cst_50 = arith.constant dense<0.000000e+00> : vector<1xf32>
    %160 = vector.multi_reduction <add>, %159, %cst_50 [1] : vector<1x18xf32> to vector<1xf32>
    %161 = vector.shape_cast %160 : vector<1xf32> to vector<1x1xf32>
    %162 = vector.extract_strided_slice %0 {offsets = [6, 0], sizes = [1, 128], strides = [1, 1]} : vector<9x128xf32> to vector<1x128xf32>
    %163 = vector.broadcast %161 : vector<1x1xf32> to vector<1x128xf32>
    %164 = arith.mulf %163, %162 : vector<1x128xf32>
    %165 = arith.addf %135, %164 : vector<1x128xf32>
    %c1_i32_51 = arith.constant 1 : i32
    %166 = vector.broadcast %c1_i32_51 : i32 to vector<1x18xi32>
    %167 = arith.cmpi sge, %2, %166 : vector<1x18xi32>
    %c17_i32_52 = arith.constant 17 : i32
    %168 = vector.broadcast %c17_i32_52 : i32 to vector<1x18xi32>
    %169 = arith.cmpi slt, %2, %168 : vector<1x18xi32>
    %170 = arith.andi %167, %169 : vector<1x18xi1>
    %c1_i32_53 = arith.constant 1 : i32
    %171 = vector.broadcast %c1_i32_53 : i32 to vector<1x18xi32>
    %172 = arith.cmpi eq, %6, %171 : vector<1x18xi32>
    %173 = arith.andi %170, %172 : vector<1x18xi1>
    %cst_54 = arith.constant 0.000000e+00 : f32
    %174 = vector.broadcast %cst_54 : f32 to vector<1x18xf32>
    %175 = arith.select %173, %149, %174 : vector<1x18xi1>, vector<1x18xf32>
    %cst_55 = arith.constant dense<0.000000e+00> : vector<1xf32>
    %176 = vector.multi_reduction <add>, %175, %cst_55 [1] : vector<1x18xf32> to vector<1xf32>
    %177 = vector.shape_cast %176 : vector<1xf32> to vector<1x1xf32>
    %178 = vector.extract_strided_slice %0 {offsets = [7, 0], sizes = [1, 128], strides = [1, 1]} : vector<9x128xf32> to vector<1x128xf32>
    %179 = vector.broadcast %177 : vector<1x1xf32> to vector<1x128xf32>
    %180 = arith.mulf %179, %178 : vector<1x128xf32>
    %181 = arith.addf %165, %180 : vector<1x128xf32>
    %c2_i32_56 = arith.constant 2 : i32
    %182 = vector.broadcast %c2_i32_56 : i32 to vector<1x18xi32>
    %183 = arith.cmpi sge, %2, %182 : vector<1x18xi32>
    %c18_i32_57 = arith.constant 18 : i32
    %184 = vector.broadcast %c18_i32_57 : i32 to vector<1x18xi32>
    %185 = arith.cmpi slt, %2, %184 : vector<1x18xi32>
    %186 = arith.andi %183, %185 : vector<1x18xi1>
    %c0_i32_58 = arith.constant 0 : i32
    %187 = vector.broadcast %c0_i32_58 : i32 to vector<1x18xi32>
    %188 = arith.cmpi eq, %6, %187 : vector<1x18xi32>
    %189 = arith.andi %186, %188 : vector<1x18xi1>
    %cst_59 = arith.constant 0.000000e+00 : f32
    %190 = vector.broadcast %cst_59 : f32 to vector<1x18xf32>
    %191 = arith.select %189, %149, %190 : vector<1x18xi1>, vector<1x18xf32>
    %cst_60 = arith.constant dense<0.000000e+00> : vector<1xf32>
    %192 = vector.multi_reduction <add>, %191, %cst_60 [1] : vector<1x18xf32> to vector<1xf32>
    %193 = vector.shape_cast %192 : vector<1xf32> to vector<1x1xf32>
    %194 = vector.extract_strided_slice %0 {offsets = [8, 0], sizes = [1, 128], strides = [1, 1]} : vector<9x128xf32> to vector<1x128xf32>
    %195 = vector.broadcast %193 : vector<1x1xf32> to vector<1x128xf32>
    %196 = arith.mulf %195, %194 : vector<1x128xf32>
    %197 = arith.addf %181, %196 : vector<1x128xf32>
    %cst_61 = arith.constant 1.562500e-02 : f32
    %198 = vector.broadcast %cst_61 : f32 to vector<1x128xf32>
    %199 = arith.mulf %197, %198 : vector<1x128xf32>
    %c0_62 = arith.constant 0 : index
    %c0_63 = arith.constant 0 : index
    %200 = vector.load %arg3[%c0_62, %c0_63] : memref<128x128xf32, #tpu.memory_space<vmem>>, vector<128x128xf32>
    %cst_64 = arith.constant dense<0.000000e+00> : vector<1x128xf32>
    %201 = tpu.matmul %199, %200, %cst_64 {dimension_numbers = #tpu.dot_dimension_numbers<[1], [0], [0], [1], [0, 0, 1, 1], [], []>} : vector<1x128xf32>, vector<128x128xf32>, vector<1x128xf32> -> vector<1x128xf32>
    %c0_65 = arith.constant 0 : index
    %c0_66 = arith.constant 0 : index
    %202 = vector.load %arg4[%c0_65, %c0_66] : memref<1x128xf32, #tpu.memory_space<vmem>>, vector<1x128xf32>
    %203 = arith.addf %201, %202 : vector<1x128xf32>
    %204 = arith.negf %203 : vector<1x128xf32>
    %205 = math.exp %204 : vector<1x128xf32>
    %cst_67 = arith.constant 1.000000e+00 : f32
    %206 = vector.broadcast %cst_67 : f32 to vector<1x128xf32>
    %207 = arith.addf %206, %205 : vector<1x128xf32>
    %208 = arith.divf %206, %207 : vector<1x128xf32>
    %c0_68 = arith.constant 0 : index
    %c0_69 = arith.constant 0 : index
    %c0_70 = arith.constant 0 : index
    %209 = vector.load %arg5[%c0_68, %c0_69, %c0_70] : memref<1x1x128xf32, #tpu.memory_space<vmem>>, vector<1x1x128xf32>
    %210 = vector.shape_cast %209 : vector<1x1x128xf32> to vector<1x128xf32>
    %211 = vector.shape_cast %208 : vector<1x128xf32> to vector<1x1x128xf32>
    tpu.vector_store %arg5[%c0_68, %c0_69, %c0_70], %211 {strides = array<i32>} : memref<1x1x128xf32, #tpu.memory_space<vmem>>, vector<1x1x128xf32>,
    return
  }
  func.func @transform_0(%arg0: i32) -> (i32, i32, i32, i32) {
    %c0_i32 = arith.constant 0 : i32
    %c0_i32_0 = arith.constant 0 : i32
    %c0_i32_1 = arith.constant 0 : i32
    %c0_i32_2 = arith.constant 0 : i32
    return %arg0, %c0_i32, %c0_i32_0, %c0_i32_1 : i32, i32, i32, i32
  }
  func.func @transform_1(%arg0: i32) -> (i32, i32) {
    %c0_i32 = arith.constant 0 : i32
    %c0_i32_0 = arith.constant 0 : i32
    %c0_i32_1 = arith.constant 0 : i32
    return %c0_i32, %c0_i32_0 : i32, i32
  }
  func.func @transform_2(%arg0: i32) -> (i32, i32) {
    %c0_i32 = arith.constant 0 : i32
    %c0_i32_0 = arith.constant 0 : i32
    %c0_i32_1 = arith.constant 0 : i32
    return %c0_i32, %c0_i32_0 : i32, i32
  }
  func.func @transform_3(%arg0: i32) -> (i32, i32) {
    %c0_i32 = arith.constant 0 : i32
    %c0_i32_0 = arith.constant 0 : i32
    %c0_i32_1 = arith.constant 0 : i32
    return %c0_i32, %c0_i32_0 : i32, i32
  }
  func.func @transform_4(%arg0: i32) -> (i32, i32, i32) {
    %c0_i32 = arith.constant 0 : i32
    %c0_i32_0 = arith.constant 0 : i32
    %c0_i32_1 = arith.constant 0 : i32
    return %arg0, %c0_i32, %c0_i32_0 : i32, i32, i32
  }
}

</mosaic_0001>

<llo_original>
// kernel: osr_classifier_forward.1
$region0: #{osr_classifier_forward.1}
  #allocation0 [shape = 'u32[]', space=smem, size = 0x4, offset = 0x4, fixed_abs, tag = 'smem constant byte address 0x4 - core index']
  #allocation1 [shape = 'u32[144,128]{1,0:T(1,128)}', space=vmem, size = 0x12000, scoped, tag = 'internal scratch']
  %s0 = inlined_call_operand.vmem [shape: bf16[2,1,18,18], index: 0, kind: input, shape index: {}]
  %s1 = inlined_call_operand.vmem [shape: f32[9,128], index: 1, kind: input, shape index: {}]
  %s2 = inlined_call_operand.vmem [shape: f32[128,128], index: 2, kind: input, shape index: {}]
  %s3 = inlined_call_operand.vmem [shape: f32[1,128], index: 3, kind: input, shape index: {}]
  %s4 = inlined_call_operand.hbm [shape: f32[2,1,128], index: 4, kind: output, shape index: {}]
  %s5 = sld [smem:[#allocation0]]
  $region49: #{osr_classifier_forward.1} parent=0
    _
  %s7 = ssub.s32 1, %s5
  %s8 = scalar_select 0, %s7, %s5
  $region1: #{osr_classifier_forward.1} parent=0
    #allocation2 [shape = 'u8[1024]{0}', space=vmem, size = 0x400, scoped, tag = 'output window, operand 0']
    #allocation3 [shape = 's32[2]{0}', space=sflag, size = 0x8, scoped, tag = 'scoped memory for osr_classifier_forward.1']
    %9 = vsyncpa [#allocation3], 0
    %s10 = scalar_lea.sflag [#allocation3], 1
    %11 = vsyncpa %s10, 0
    loop: start=0, step=1, limit=4
    $region2: #{osr_classifier_forward.1} parent=1 // loop_pre_header
      _
    $region3: #{osr_classifier_forward.1} parent=1 // loop_header
      %s13 = sphi 0, %s17
      %p14 = scmp.ge.s32.totalorder %s13, 4
      %s23 = sphi 0, %s25
      %s26 = sphi 0, %s23
      %s27 = sphi 0, %s26
      %s43 = sphi 0, %s27
      %s47 = sphi 0, %s47
      %s49 = sphi 0, %s47
      %s50 = sphi 0, %s49
      %s64 = sphi 0, %s50
      %s68 = sphi 0, %s68
      %s70 = sphi 0, %s68
      %s71 = sphi 0, %s70
      %s85 = sphi 0, %s71
      %s89 = sphi 0, %s89
      %s91 = sphi 0, %s89
      %s92 = sphi 0, %s91
      %s106 = sphi 0, %s92
      %s112 = sphi 0, %s114
      %s115 = sphi 0, %s112
      %s116 = sphi 0, %s115
      %s132 = sphi 0, %s116
    $region4: #{osr_classifier_forward.1} parent=1 // loop_header_branch
      %16 = sbr.rel (%p14) target = $region8
    $region5: #{osr_classifier_forward.1} parent=1 // loop_body
      %s18 = ssub.s32 %s13, 1
      %s19 = ssub.s32 %s13, 2
      %s20 = sadd.s32 %s13, 1
      %s21 = ssub.s32 %s13, %s20
      %p22 = scmp.eq.s32.totalorder %s21, 0
      %s24 = sadd.s32 %s23, 1
      %s25 = scalar_select %p22, %s23, %s24
      %p28 = pneg %p22
      %p29 = scmp.eq.s32.totalorder %s13, 1
      %p30 = por %p28, %p29
      %p31 = scmp.ne.s32.totalorder %s23, %s26
      %p32 = scmp.eq.s32.totalorder %s13, 0
      %p33 = por %p31, %p32
      %p34 = scmp.ne.s32.totalorder %s23, %s26
      %p35 = scmp.eq.s32.totalorder %s18, 1
      %p36 = por %p34, %p35
      %p37 = scmp.ne.s32.totalorder %s26, %s27
      %p38 = scmp.eq.s32.totalorder %s18, 0
      %p39 = por %p37, %p38
      %p40 = scmp.ne.s32.totalorder %s26, %s27
      %p41 = scmp.eq.s32.totalorder %s19, 1
      %p42 = por %p40, %p41
      %p44 = scmp.ne.s32.totalorder %s27, %s43
      %p45 = scmp.eq.s32.totalorder %s19, 0
      %p46 = por %p44, %p45
      %s48 = sadd.s32 %s47, 1
      %p51 = scmp.eq.s32.totalorder %s13, 1
      %p52 = scmp.ne.s32.totalorder %s47, %s49
      %p53 = scmp.eq.s32.totalorder %s13, 0
      %p54 = por %p52, %p53
      %p55 = scmp.ne.s32.totalorder %s47, %s49
      %p56 = scmp.eq.s32.totalorder %s18, 1
      %p57 = por %p55, %p56
      %p58 = scmp.ne.s32.totalorder %s49, %s50
      %p59 = scmp.eq.s32.totalorder %s18, 0
      %p60 = por %p58, %p59
      %p61 = scmp.ne.s32.totalorder %s49, %s50
      %p62 = scmp.eq.s32.totalorder %s19, 1
      %p63 = por %p61, %p62
      %p65 = scmp.ne.s32.totalorder %s50, %s64
      %p66 = scmp.eq.s32.totalorder %s19, 0
      %p67 = por %p65, %p66
      %s69 = sadd.s32 %s68, 1
      %p72 = scmp.eq.s32.totalorder %s13, 1
      %p73 = scmp.ne.s32.totalorder %s68, %s70
      %p74 = scmp.eq.s32.totalorder %s13, 0
      %p75 = por %p73, %p74
      %p76 = scmp.ne.s32.totalorder %s68, %s70
      %p77 = scmp.eq.s32.totalorder %s18, 1
      %p78 = por %p76, %p77
      %p79 = scmp.ne.s32.totalorder %s70, %s71
      %p80 = scmp.eq.s32.totalorder %s18, 0
      %p81 = por %p79, %p80
      %p82 = scmp.ne.s32.totalorder %s70, %s71
      %p83 = scmp.eq.s32.totalorder %s19, 1
      %p84 = por %p82, %p83
      %p86 = scmp.ne.s32.totalorder %s71, %s85
      %p87 = scmp.eq.s32.totalorder %s19, 0
      %p88 = por %p86, %p87
      %s90 = sadd.s32 %s89, 1
      %p93 = scmp.eq.s32.totalorder %s13, 1
      %p94 = scmp.ne.s32.totalorder %s89, %s91
      %p95 = scmp.eq.s32.totalorder %s13, 0
      %p96 = por %p94, %p95
      %p97 = scmp.ne.s32.totalorder %s89, %s91
      %p98 = scmp.eq.s32.totalorder %s18, 1
      %p99 = por %p97, %p98
      %p100 = scmp.ne.s32.totalorder %s91, %s92
      %p101 = scmp.eq.s32.totalorder %s18, 0
      %p102 = por %p100, %p101
      %p103 = scmp.ne.s32.totalorder %s91, %s92
      %p104 = scmp.eq.s32.totalorder %s19, 1
      %p105 = por %p103, %p104
      %p107 = scmp.ne.s32.totalorder %s92, %s106
      %p108 = scmp.eq.s32.totalorder %s19, 0
      %p109 = por %p107, %p108
      %s110 = ssub.s32 %s13, %s20
      %p111 = scmp.eq.s32.totalorder %s110, 0
      %s113 = sadd.s32 %s112, 1
      %s114 = scalar_select %p111, %s112, %s113
      %p117 = pneg %p111
      %p118 = scmp.eq.s32.totalorder %s13, 1
      %p119 = por %p117, %p118
      %p120 = scmp.ne.s32.totalorder %s112, %s115
      %p121 = scmp.eq.s32.totalorder %s13, 0
      %p122 = por %p120, %p121
      %p123 = scmp.ne.s32.totalorder %s112, %s115
      %p124 = scmp.eq.s32.totalorder %s18, 1
      %p125 = por %p123, %p124
      %p126 = scmp.ne.s32.totalorder %s115, %s116
      %p127 = scmp.eq.s32.totalorder %s18, 0
      %p128 = por %p126, %p127
      %p129 = scmp.ne.s32.totalorder %s115, %s116
      %p130 = scmp.eq.s32.totalorder %s19, 1
      %p131 = por %p129, %p130
      %p133 = scmp.ne.s32.totalorder %s116, %s132
      %p134 = scmp.eq.s32.totalorder %s19, 0
      %p135 = por %p133, %p134
      %p136 = scmp.le.s32.totalorder 1, %s13
      %p137 = scmp.lt.s32.totalorder %s13, 3
      %p138 = pnand %p136, %p137
      %p139 = pneg %p138
      // Predicated region
      $region9: #{osr_classifier_forward.1} parent=5 // pred_check
        _
      $region10: #{osr_classifier_forward.1} parent=5 // pred_check_branch
        %141 = sbr.rel (%p138) target = $region12
      $region11: #{osr_classifier_forward.1} parent=5 // pred_region
        %s142 = ssub.s32 %s13, 1
        // Predicated region
        $region13: #{osr_classifier_forward.1} parent=11 // pred_check
          %p143 = pneg %p60
        $region14: #{osr_classifier_forward.1} parent=11 // pred_check_branch
          %145 = sbr.rel (%p143) target = $region16
        $region15: #{osr_classifier_forward.1} parent=11 // pred_region
          _
        $region16: #{osr_classifier_forward.1} parent=11 // pred_fallthru
          _
        // Predicated region
        $region17: #{osr_classifier_forward.1} parent=11 // pred_check
          %p146 = pneg %p81
        $region18: #{osr_classifier_forward.1} parent=11 // pred_check_branch
          %148 = sbr.rel (%p146) target = $region20
        $region19: #{osr_classifier_forward.1} parent=11 // pred_region
          _
        $region20: #{osr_classifier_forward.1} parent=11 // pred_fallthru
          _
        // Predicated region
        $region21: #{osr_classifier_forward.1} parent=11 // pred_check
          %p149 = pneg %p102
        $region22: #{osr_classifier_forward.1} parent=11 // pred_check_branch
          %151 = sbr.rel (%p149) target = $region24
        $region23: #{osr_classifier_forward.1} parent=11 // pred_region
          _
        $region24: #{osr_classifier_forward.1} parent=11 // pred_fallthru
          _
      $region12: #{osr_classifier_forward.1} parent=5 // pred_fallthru
        _
      %p152 = scmp.lt.s32.totalorder %s13, 2
      // Predicated region
      $region25: #{osr_classifier_forward.1} parent=5 // pred_check
        %p153 = pneg %p152
      $region26: #{osr_classifier_forward.1} parent=5 // pred_check_branch
        %155 = sbr.rel (%p153) target = $region28
      $region27: #{osr_classifier_forward.1} parent=5 // pred_region
        // Predicated region
        $region29: #{osr_classifier_forward.1} parent=27 // pred_check
          %p156 = pneg %p33
        $region30: #{osr_classifier_forward.1} parent=27 // pred_check_branch
          %158 = sbr.rel (%p156) target = $region32
        $region31: #{osr_classifier_forward.1} parent=27 // pred_region
          %p159 = scmp.lt.s32.totalorder %s13, 1
          %s160 = scalar_select %p159, %s13, 1
          %s161 = smul.addr %s160, 3
          %s162 = smul.addr %s161, 4
          %s163 = scalar_lea.vmem %s0, %s162
        $region32: #{osr_classifier_forward.1} parent=27 // pred_fallthru
          _
      $region28: #{osr_classifier_forward.1} parent=5 // pred_fallthru
        _
      %p164 = scmp.le.s32.totalorder 1, %s13
      %p165 = scmp.lt.s32.totalorder %s13, 3
      %p166 = pnand %p164, %p165
      %p167 = pneg %p166
      // Predicated region
      $region33: #{osr_classifier_forward.1} parent=5 // pred_check
        _
      $region34: #{osr_classifier_forward.1} parent=5 // pred_check_branch
        %169 = sbr.rel (%p166) target = $region36
      $region35: #{osr_classifier_forward.1} parent=5 // pred_region
        %s170 = ssub.s32 %s13, 1
        %p171 = scmp.lt.s32.totalorder %s18, 1
        %s172 = scalar_select %p171, %s18, 1
        %s173 = smul.addr %s172, 3
        %s174 = smul.addr %s173, 4
        %s175 = scalar_lea.vmem %s0, %s174
        %p176 = pneg %p39
        %p177 = pneg %p36
        %p178 = pneg %p60
        %p179 = pneg %p57
        %p180 = pneg %p81
        %p181 = pneg %p78
        %p182 = pneg %p102
        %p183 = pneg %p99
        %p184 = pneg %p128
        %p185 = pneg %p125
        %s186 = sand.u32 %s115, 1
        %s187 = scalar_lea.sflag [#allocation3], %s186
        %s188 = sand.u32 %s115, 1
        %s189 = scalar_lea.vmem [#allocation2], %s188
        %p190 = scmp.lt.s32.totalorder %s18, 1
        %s191 = scalar_select %p190, %s18, 1
        %s192 = smul.addr %s191, 3
        %s193 = smul.addr %s192, 4
        %s194 = scalar_lea.vmem %s0, %s193
        %v195 = vld [vmem:[%s1] sm:$0xff]
        %v196 = vld [vmem:[%s1 + $0x8] sm:$0x1]
        %v197 = vlaneseq
        %v198 = vshrl.u32 %v197, 7
        %v199 = vadd.s32 %v198, 8
        %v200 = vadd.s32 %v198, 16
        %v201 = vlaneseq
        %v202 = vand.u32 %v201, 127
        %v203 = vand.u32 %v198, 1
        %v204 = vand.u32 %v199, 1
        %v205 = vand.u32 %v200, 1
        %v206 = vand.u32 %v202, 1
        %v207 = vld [vmem:[%s194] sm:$0xf]
        %v208 = vld [vmem:[%s194 + $0x4] sm:$0xf]
        %v209 = vld [vmem:[%s194 + $0x8] sm:$0x1]
        %v210 = vunpack.c.l.bf16 %v207
        %v211 = vunpack.c.l.bf16 %v208
        %v212 = vunpack.c.l.bf16 %v209
        %vm213 = vcmp.ge.s32.totalorder %v198, 0
        %vm214 = vcmp.ge.s32.totalorder %v199, 0
        %vm215 = vcmp.ge.s32.totalorder %v200, 0
        %vm216 = vcmp.lt.s32.totalorder %v198, 16
        %vm217 = vcmp.lt.s32.totalorder %v199, 16
        %vm218 = vcmp.lt.s32.totalorder %v200, 16
        %vm219 = vmand %vm213, %vm216
        %vm220 = vmand %vm214, %vm217
        %vm221 = vmand %vm215, %vm218
        %vm222 = vcmp.eq.s32.totalorder %v203, 0
        %vm223 = vcmp.eq.s32.totalorder %v204, 0
        %vm224 = vcmp.eq.s32.totalorder %v205, 0
        %vm225 = vmand %vm219, %vm222
        %vm226 = vmand %vm220, %vm223
        %vm227 = vmand %vm221, %vm224
        %v228 = vsel %vm225, 1, 0
        %v229 = vsel %vm226, 1, 0
        %v230 = vsel %vm227, 1, 0
        %vm231 = vcmp.eq.s32.totalorder %v228, 1
        %vm232 = vcmp.eq.s32.totalorder %v229, 1
        %vm233 = vcmp.eq.s32.totalorder %v230, 1
        %v234 = vsel %vm231, %v210, 0.0
        %v235 = vsel %vm232, %v211, 0.0
        %v236 = vsel %vm233, %v212, 0.0
        %vm237 = vcmask 146432
        %v238 = vsel %vm237, %v234, 0.0
        %v239 = vsel %vm237, %v235, 0.0
        %v240 = vadd.f32 %v238, %v239
        %vm241 = vcmask 140288
        %v242 = vsel %vm241, %v236, 0.0
        %v243 = vadd.f32 %v240, %v242
        %v244 = vrot.slane %v243, 4
        %v245 = vadd.f32 %v243, %v244
        %v246 = vrot.slane %v245, 2
        %v247 = vadd.f32 %v245, %v246
        %v248 = vrot.slane %v247, 1
        %v249 = vadd.f32 %v247, %v248
        %vm250 = vcmp.ge.s32.totalorder %v202, 0
        %vm251 = vcmp.lt.s32.totalorder %v202, 16
        %vm252 = vmand %vm250, %vm251
        %vm253 = vcmp.eq.s32.totalorder %v206, 0
        %vm254 = vmand %vm252, %vm253
        %v255 = vsel %vm254, %v249, 0.0
        %v256 = vsel %vm237, %v255, 0.0
        %257 = vadd.xlane.f32.xlu0 %v256
        %v258 = vpop.xlane.xlu0 %257
        %v259 = vmul.f32 %v258, %v195
        %v260 = vadd.f32 %v259, 0.0
        %vm261 = vcmp.ge.s32.totalorder %v202, 1
        %vm262 = vcmp.lt.s32.totalorder %v202, 17
        %vm263 = vmand %vm261, %vm262
        %vm264 = vcmp.eq.s32.totalorder %v206, 1
        %vm265 = vmand %vm263, %vm264
        %v266 = vsel %vm265, %v249, 0.0
        %v267 = vsel %vm237, %v266, 0.0
        %268 = vadd.xlane.f32.xlu0 %v267
        %v269 = vpop.xlane.xlu0 %268
        %v270 = vmul.f32 %v269, %v195
        %v272 = vrot.slane %v270, 1
        %v274 = vadd.f32 %v260, %v272
        %vm275 = vcmp.ge.s32.totalorder %v202, 2
        %vm276 = vcmp.lt.s32.totalorder %v202, 18
        %vm277 = vmand %vm275, %vm276
        %vm278 = vmand %vm277, %vm253
        %v279 = vsel %vm278, %v249, 0.0
        %v280 = vsel %vm237, %v279, 0.0
        %281 = vadd.xlane.f32.xlu0 %v280
        %v282 = vpop.xlane.xlu0 %281
        %v283 = vmul.f32 %v282, %v195
        %v285 = vrot.slane %v283, 2
        %v287 = vadd.f32 %v274, %v285
        %vm288 = vcmp.ge.s32.totalorder %v198, 1
        %vm289 = vcmp.ge.s32.totalorder %v199, 1
        %vm290 = vcmp.ge.s32.totalorder %v200, 1
        %vm291 = vcmp.lt.s32.totalorder %v198, 17
        %vm292 = vcmp.lt.s32.totalorder %v199, 17
        %vm293 = vcmp.lt.s32.totalorder %v200, 17
        %vm294 = vmand %vm288, %vm291
        %vm295 = vmand %vm289, %vm292
        %vm296 = vmand %vm290, %vm293
        %vm297 = vcmp.eq.s32.totalorder %v203, 1
        %vm298 = vcmp.eq.s32.totalorder %v204, 1
        %vm299 = vcmp.eq.s32.totalorder %v205, 1
        %vm300 = vmand %vm294, %vm297
        %vm301 = vmand %vm295, %vm298
        %vm302 = vmand %vm296, %vm299
        %v303 = vsel %vm300, 1, 0
        %v304 = vsel %vm301, 1, 0
        %v305 = vsel %vm302, 1, 0
        %vm306 = vcmp.eq.s32.totalorder %v303, 1
        %vm307 = vcmp.eq.s32.totalorder %v304, 1
        %vm308 = vcmp.eq.s32.totalorder %v305, 1
        %v309 = vsel %vm306, %v210, 0.0
        %v310 = vsel %vm307, %v211, 0.0
        %v311 = vsel %vm308, %v212, 0.0
        %v312 = vsel %vm237, %v309, 0.0
        %v313 = vsel %vm237, %v310, 0.0
        %v314 = vadd.f32 %v312, %v313
        %v315 = vsel %vm241, %v311, 0.0
        %v316 = vadd.f32 %v314, %v315
        %v317 = vrot.slane %v316, 4
        %v318 = vadd.f32 %v316, %v317
        %v319 = vrot.slane %v318, 2
        %v320 = vadd.f32 %v318, %v319
        %v321 = vrot.slane %v320, 1
        %v322 = vadd.f32 %v320, %v321
        %v323 = vsel %vm254, %v322, 0.0
        %v324 = vsel %vm237, %v323, 0.0
        %325 = vadd.xlane.f32.xlu0 %v324
        %v326 = vpop.xlane.xlu0 %325
        %v327 = vmul.f32 %v326, %v195
        %v329 = vrot.slane %v327, 3
        %v331 = vadd.f32 %v287, %v329
        %v332 = vsel %vm265, %v322, 0.0
        %v333 = vsel %vm237, %v332, 0.0
        %334 = vadd.xlane.f32.xlu0 %v333
        %v335 = vpop.xlane.xlu0 %334
        %v336 = vmul.f32 %v335, %v195
        %v338 = vrot.slane %v336, 4
        %v340 = vadd.f32 %v331, %v338
        %v341 = vsel %vm278, %v322, 0.0
        %v342 = vsel %vm237, %v341, 0.0
        %343 = vadd.xlane.f32.xlu0 %v342
        %v344 = vpop.xlane.xlu0 %343
        %v345 = vmul.f32 %v344, %v195
        %v347 = vrot.slane %v345, 5
        %v349 = vadd.f32 %v340, %v347
        %vm350 = vcmp.ge.s32.totalorder %v198, 2
        %vm351 = vcmp.ge.s32.totalorder %v199, 2
        %vm352 = vcmp.ge.s32.totalorder %v200, 2
        %vm353 = vcmp.lt.s32.totalorder %v198, 18
        %vm354 = vcmp.lt.s32.totalorder %v199, 18
        %vm355 = vcmp.lt.s32.totalorder %v200, 18
        %vm356 = vmand %vm350, %vm353
        %vm357 = vmand %vm351, %vm354
        %vm358 = vmand %vm352, %vm355
        %vm359 = vmand %vm356, %vm222
        %vm360 = vmand %vm357, %vm223
        %vm361 = vmand %vm358, %vm224
        %v362 = vsel %vm359, 1, 0
        %v363 = vsel %vm360, 1, 0
        %v364 = vsel %vm361, 1, 0
        %vm365 = vcmp.eq.s32.totalorder %v362, 1
        %vm366 = vcmp.eq.s32.totalorder %v363, 1
        %vm367 = vcmp.eq.s32.totalorder %v364, 1
        %v368 = vsel %vm365, %v210, 0.0
        %v369 = vsel %vm366, %v211, 0.0
        %v370 = vsel %vm367, %v212, 0.0
        %v371 = vsel %vm237, %v368, 0.0
        %v372 = vsel %vm237, %v369, 0.0
        %v373 = vadd.f32 %v371, %v372
        %v374 = vsel %vm241, %v370, 0.0
        %v375 = vadd.f32 %v373, %v374
        %v376 = vrot.slane %v375, 4
        %v377 = vadd.f32 %v375, %v376
        %v378 = vrot.slane %v377, 2
        %v379 = vadd.f32 %v377, %v378
        %v380 = vrot.slane %v379, 1
        %v381 = vadd.f32 %v379, %v380
        %v382 = vsel %vm254, %v381, 0.0
        %v383 = vsel %vm237, %v382, 0.0
        %384 = vadd.xlane.f32.xlu0 %v383
        %v385 = vpop.xlane.xlu0 %384
        %v386 = vmul.f32 %v385, %v195
        %v388 = vrot.slane %v386, 6
        %v390 = vadd.f32 %v349, %v388
        %v391 = vsel %vm265, %v381, 0.0
        %v392 = vsel %vm237, %v391, 0.0
        %393 = vadd.xlane.f32.xlu0 %v392
        %v394 = vpop.xlane.xlu0 %393
        %v395 = vmul.f32 %v394, %v195
        %v397 = vrot.slane %v395, 7
        %v399 = vadd.f32 %v390, %v397
        %v400 = vsel %vm278, %v381, 0.0
        %v401 = vsel %vm237, %v400, 0.0
        %402 = vadd.xlane.f32.xlu0 %v401
        %v403 = vpop.xlane.xlu0 %402
        %v404 = vmul.f32 %v403, %v196
        %v405 = vadd.f32 %v399, %v404
        %v406 = vmul.f32 %v405, 0.015625
        %v407 = vld [vmem:[%s2] sm:$0xff]
        %v408 = vld [vmem:[%s2 + $0x8] sm:$0xff]
        %v409 = vld [vmem:[%s2 + $0x10] sm:$0xff]
        %v410 = vld [vmem:[%s2 + $0x18] sm:$0xff]
        %v411 = vld [vmem:[%s2 + $0x20] sm:$0xff]
        %v412 = vld [vmem:[%s2 + $0x28] sm:$0xff]
        %v413 = vld [vmem:[%s2 + $0x30] sm:$0xff]
        %v414 = vld [vmem:[%s2 + $0x38] sm:$0xff]
        %v415 = vld [vmem:[%s2 + $0x40] sm:$0xff]
        %v416 = vld [vmem:[%s2 + $0x48] sm:$0xff]
        %v417 = vld [vmem:[%s2 + $0x50] sm:$0xff]
        %v418 = vld [vmem:[%s2 + $0x58] sm:$0xff]
        %v419 = vld [vmem:[%s2 + $0x60] sm:$0xff]
        %v420 = vld [vmem:[%s2 + $0x68] sm:$0xff]
        %v421 = vld [vmem:[%s2 + $0x70] sm:$0xff]
        %v422 = vld [vmem:[%s2 + $0x78] sm:$0xff]
        %v423 = vld [vmem:[%s3] sm:$0x1]
        %424 = vmatprep.subr.mxu0 0.0
        %425 = vmatpush1.msra.mxu0 %v407
        %426 = vmatprep.subr.mxu0 0.0
        %427 = vmatpush1.msra.mxu0 %v408
        %428 = vmatprep.subr.mxu0 0.0
        %429 = vmatpush1.msra.mxu0 %v409
        %430 = vmatprep.subr.mxu0 0.0
        %431 = vmatpush1.msra.mxu0 %v410
        %432 = vmatprep.subr.mxu0 0.0
        %433 = vmatpush1.msra.mxu0 %v411
        %434 = vmatprep.subr.mxu0 0.0
        %435 = vmatpush1.msra.mxu0 %v412
        %436 = vmatprep.subr.mxu0 0.0
        %437 = vmatpush1.msra.mxu0 %v413
        %438 = vmatprep.subr.mxu0 0.0
        %439 = vmatpush1.msra.mxu0 %v414
        %440 = vmatprep.subr.mxu0 0.0
        %441 = vmatpush1.msra.mxu0 %v415
        %442 = vmatprep.subr.mxu0 0.0
        %443 = vmatpush1.msra.mxu0 %v416
        %444 = vmatprep.subr.mxu0 0.0
        %445 = vmatpush1.msra.mxu0 %v417
        %446 = vmatprep.subr.mxu0 0.0
        %447 = vmatpush1.msra.mxu0 %v418
        %448 = vmatprep.subr.mxu0 0.0
        %449 = vmatpush1.msra.mxu0 %v419
        %450 = vmatprep.subr.mxu0 0.0
        %451 = vmatpush1.msra.mxu0 %v420
        %452 = vmatprep.subr.mxu0 0.0
        %453 = vmatpush1.msra.mxu0 %v421
        %454 = vmatprep.subr.mxu0 0.0
        %455 = vmatpush1.msra.mxu0 %v422
        %456 = vmatprep.subr.mxu0 0.0
        %457 = vmatpush1.msra.mxu0 0.0
        %458 = vmatprep.subr.mxu0 0.0
        %459 = vmatpush1.msra.mxu0 0.0
        %460 = vmatprep.subr.mxu0 0.0
        %461 = vmatpush1.msra.mxu0 0.0
        %462 = vmatprep.subr.mxu0 0.0
        %463 = vmatpush1.msra.mxu0 0.0
        %464 = vmatprep.subr.mxu0 0.0
        %465 = vmatpush1.msra.mxu0 0.0
        %466 = vmatprep.subr.mxu0 0.0
        %467 = vmatpush1.msra.mxu0 0.0
        %468 = vmatprep.subr.mxu0 0.0
        %469 = vmatpush1.msra.mxu0 0.0
        %470 = vmatprep.subr.mxu0 0.0
        %471 = vmatpush1.msra.mxu0 0.0
        %472 = vmatprep.subr.mxu0 0.0
        %473 = vmatpush1.msra.mxu0 0.0
        %474 = vmatprep.subr.mxu0 0.0
        %475 = vmatpush1.msra.mxu0 0.0
        %476 = vmatprep.subr.mxu0 0.0
        %477 = vmatpush1.msra.mxu0 0.0
        %478 = vmatprep.subr.mxu0 0.0
        %479 = vmatpush1.msra.mxu0 0.0
        %480 = vmatprep.subr.mxu0 0.0
        %481 = vmatpush1.msra.mxu0 0.0
        %482 = vmatprep.subr.mxu0 0.0
        %483 = vmatpush1.msra.mxu0 0.0
        %484 = vmatprep.subr.mxu0 0.0
        %485 = vmatpush1.msra.mxu0 0.0
        %486 = vmatprep.subr.mxu0 0.0
        %487 = vmatpush1.msra.mxu0 0.0
        %488 = vmatprep.mubr.f32.mxu0 0.0
        %489 = vmatmul.mubr.f32.gmra.mrb[0].mxu0 %v406
        %v490 = vpop.f32.mrb[0].mxu0
        %v491 = vadd.f32 %v423, %v490
        %v492 = vpop.f32.mrb[0].mxu0
        %493 = vdwg.mxu0
        %v494 = vxor.u32 %v491, 2147483648
        %v495 = vmul.f32 %v494, 1.442695
        %v496 = vpow.pop %v495
        %v497 = vadd.f32 %v496, 1.0
        %v498 = vrcp.pop %v497
        %v499 = vmul.f32 1.0, %v498
        %500 = vst [vmem:[%s189] sm:$0x1] %v499
        %s501 = sand.u32 %s115, 1
        %s502 = scalar_lea.sflag [#allocation3], %s501
        %s503 = sand.u32 %s115, 1
        %s504 = scalar_lea.vmem [#allocation2], %s503
        // Predicated region
        $region37: #{osr_classifier_forward.1} parent=35 // pred_check
          %p505 = pneg %p125
        $region38: #{osr_classifier_forward.1} parent=35 // pred_check_branch
          %507 = sbr.rel (%p505) target = $region40
        $region39: #{osr_classifier_forward.1} parent=35 // pred_region
          %s509 = ssub.s32 16, 16
          %510 = vsyncadd %s502, %s509
          %s511 = smul.addr %s18, 16
          %s512 = scalar_lea.hbm %s4, %s511
          %s514 = sshll.u32 %s504, 4
          %s515 = int_to_ptr.vmem [resolvable:$true] %s514
          %517 = dma.vmem_to_hbm [thread:$0]  %s515, 16, %s512, %s502
        $region40: #{osr_classifier_forward.1} parent=35 // pred_fallthru
          _
      $region36: #{osr_classifier_forward.1} parent=5 // pred_fallthru
        _
      %p518 = scmp.le.s32.totalorder 2, %s13
      // Predicated region
      $region41: #{osr_classifier_forward.1} parent=5 // pred_check
        %p519 = pneg %p518
      $region42: #{osr_classifier_forward.1} parent=5 // pred_check_branch
        %521 = sbr.rel (%p519) target = $region44
      $region43: #{osr_classifier_forward.1} parent=5 // pred_region
        %s522 = ssub.s32 %s13, 2
        // Predicated region
        $region45: #{osr_classifier_forward.1} parent=43 // pred_check
          %p523 = pneg %p131
        $region46: #{osr_classifier_forward.1} parent=43 // pred_check_branch
          %525 = sbr.rel (%p523) target = $region48
        $region47: #{osr_classifier_forward.1} parent=43 // pred_region
          %s526 = sand.u32 %s116, 1
          %s527 = scalar_lea.sflag [#allocation3], %s526
          %s528 = sand.u32 %s116, 1
          %s529 = scalar_lea.vmem [#allocation2], %s528
          %530 = dma.done %s527, 16
        $region48: #{osr_classifier_forward.1} parent=43 // pred_fallthru
          _
      $region44: #{osr_classifier_forward.1} parent=5 // pred_fallthru
        _
    $region6: #{osr_classifier_forward.1} parent=1 // loop_footer
      %s17 = sadd.s32 1, %s13
    $region7: #{osr_classifier_forward.1} parent=1 // loop_footer_branch
      %12 = sbr.rel target = $region3
    $region8: #{osr_classifier_forward.1} parent=1 // loop_exit
      _
    %531 = vsyncpa [#allocation3], 1
    %s532 = scalar_lea.sflag [#allocation3], 1
    %533 = vsyncpa %s532, 1

</llo_original>
